<compile_context>
chip_gen: v5e
topology: v5e:2x2
jax: 0.10.0
libtpu: 0.0.40
codegen_flags: <defaults>
</compile_context>

<pallas_src>
import functools
import math

import jax
import jax.numpy as jnp
from jax import lax
from jax.experimental import pallas as pl
from jax.experimental.pallas import tpu as pltpu


def _round_up(x, m):
    return (x + m - 1) // m * m


@functools.partial(jax.jit, static_argnames=("t_chunk", "mxu_dtype"))
def lstm_cell_seq(embeds_seq, h0, c0, w_ih_k, w_hh_k, *, t_chunk=None,
                  mxu_dtype=jnp.float32):
    """Run the LSTMCell recurrence over a (T, B, E) sequence in one pallas_call."""
    T, B, E = embeds_seq.shape
    H = h0.shape[-1]
    G = 4 * H
    SPAD = max(_round_up(2 * H, 128), 128)          # lane-dense carried state

    if t_chunk is None:
        t_chunk = T                                  # whole sequence resident
    num_chunks = pl.cdiv(T, t_chunk)
    T_padded = num_chunks * t_chunk
    needs_mask = (T_padded != T)

    if needs_mask:                                   # pad time axis; masked in-kernel
        pad = jnp.zeros((T_padded - T, B, E), embeds_seq.dtype)
        embeds_seq = jnp.concatenate([embeds_seq, pad], axis=0)

    # Packed, lane-dense initial state [h0 | c0 | 0].
    parts = [h0.astype(jnp.float32), c0.astype(jnp.float32)]
    if SPAD > 2 * H:
        parts.append(jnp.zeros((B, SPAD - 2 * H), jnp.float32))
    state0 = jnp.concatenate(parts, axis=-1)

    # MXU operands (f32 by default; bf16 recommended at production sizes).
    x_seq = embeds_seq.astype(mxu_dtype)
    w_ih = w_ih_k.astype(mxu_dtype)                  # (E, 4H)
    w_hh = w_hh_k.astype(mxu_dtype)                  # (H, 4H)

    def kernel(x_ref, w_ih_ref, w_hh_ref, state0_ref, state_ref, xproj_ref):
        n = pl.program_id(0)

        @pl.when(n == 0)
        def _():
            state_ref[...] = state0_ref[...]

        TC = x_ref.shape[0]
        # Hoisted input projection: one (TC*B, E) @ (E, 4H) matmul per chunk.
        x_flat = x_ref[...].reshape(TC * B, E)
        xproj_ref[...] = jnp.dot(
            x_flat, w_ih_ref[...],
            preferred_element_type=jnp.float32).reshape(TC, B, G)

        w_hh_v = w_hh_ref[...]                        # resident recurrent weight

        h_init = state_ref[:, :H]
        c_init = state_ref[:, H:2 * H]

        # Lane mask selecting the g-gate lanes among [i, f, g, o].
        lane = lax.broadcasted_iota(jnp.int32, (B, G), dimension=1)
        is_g = (lane >= 2 * H) & (lane < 3 * H)

        t_base = n * t_chunk

        def step(t, carry):
            h, c = carry
            gates = xproj_ref[t] + jnp.dot(
                h.astype(w_hh_v.dtype), w_hh_v,
                preferred_element_type=jnp.float32)
            # Single EUP push: sigmoid over all 4H lanes.  g columns of the
            # weights were pre-scaled by 2, so tanh(g_raw) = 2*sigmoid(2*g_raw)-1.
            s = jax.nn.sigmoid(gates)
            act = jnp.where(is_g, 2.0 * s - 1.0, s)
            i_g = act[:, 0 * H:1 * H]
            f_g = act[:, 1 * H:2 * H]
            g_g = act[:, 2 * H:3 * H]
            o_g = act[:, 3 * H:4 * H]
            c_new = f_g * c + i_g * g_g
            h_new = o_g * jnp.tanh(c_new)
            if needs_mask:                            # padded tail steps: keep state
                valid = (t_base + t) < T
                h_new = jnp.where(valid, h_new, h)
                c_new = jnp.where(valid, c_new, c)
            return h_new, c_new

        h_fin, c_fin = lax.fori_loop(0, t_chunk, step, (h_init, c_init),
                                     unroll=True)

        # Lane-dense packed store of the carried state (last dim = SPAD, 128-multiple).
        out_parts = [h_fin, c_fin]
        if SPAD > 2 * H:
            out_parts.append(jnp.zeros((B, SPAD - 2 * H), jnp.float32))
        state_ref[...] = jnp.concatenate(out_parts, axis=-1)

    state_out = pl.pallas_call(
        kernel,
        out_shape=jax.ShapeDtypeStruct((B, SPAD), jnp.float32),
        grid_spec=pltpu.PrefetchScalarGridSpec(
            num_scalar_prefetch=0,
            grid=(num_chunks,),
            in_specs=[
                pl.BlockSpec((t_chunk, B, E), lambda n: (n, 0, 0)),  # streamed chunk
                pl.BlockSpec((E, G), lambda n: (0, 0)),              # W_ih^T, resident
                pl.BlockSpec((H, G), lambda n: (0, 0)),              # W_hh^T, resident
                pl.BlockSpec((B, SPAD), lambda n: (0, 0)),           # initial state
            ],
            out_specs=pl.BlockSpec((B, SPAD), lambda n: (0, 0)),     # carried state
            scratch_shapes=[pltpu.VMEM((t_chunk, B, G), jnp.float32)],
        ),
        compiler_params=pltpu.CompilerParams(
            dimension_semantics=("arbitrary",)),                      # serial recurrence
    )(x_seq, w_ih, w_hh, state0)

    return state_out[:, :H], state_out[:, H:2 * H]


def state_net_forward(states, embeds, params):
    """StateNet.forward: states = LSTMCell(embeds, states); return states."""
    h, c = states
    w_ih_k, w_hh_k = params
    return lstm_cell_seq(embeds[None, ...], h, c, w_ih_k, w_hh_k)


def state_net_forward_seq(states, embeds_seq, params, *, t_chunk=None):
    """Apply the cell over a (T, B, E) sequence with the time loop inside the kernel."""
    h, c = states
    w_ih_k, w_hh_k = params
    return lstm_cell_seq(embeds_seq, h, c, w_ih_k, w_hh_k, t_chunk=t_chunk)


def init_state_net_params(key, embed_size, state_size):
    """xavier_init-equivalent LSTMCell parameters.

    weight_ih: (4H, E) ~ N(0, sqrt(2/(4H+E))); weight_hh: (4H, H) ~ N(0, sqrt(2/(4H+H)))
    bias_ih, bias_hh: zero-filled by xavier_init -> dropped from the kernel.
    Kernel-layout weights are transposed and have the g-gate columns scaled by 2
    (so the in-kernel single-sigmoid trick recovers tanh exactly).
    """
    k1, k2 = jax.random.split(key)
    four_h = 4 * state_size
    w_ih = jax.random.normal(k1, (four_h, embed_size), jnp.float32) * math.sqrt(
        2.0 / (four_h + embed_size))
    w_hh = jax.random.normal(k2, (four_h, state_size), jnp.float32) * math.sqrt(
        2.0 / (four_h + state_size))
    gate_scale = jnp.ones((four_h,), jnp.float32).at[
        2 * state_size:3 * state_size].set(2.0)
    w_ih_k = w_ih.T * gate_scale[None, :]            # (E, 4H)
    w_hh_k = w_hh.T * gate_scale[None, :]            # (H, 4H)
    return (w_ih_k, w_hh_k), (w_ih, w_hh)


def reference_lstm_cell(x, h, c, w_ih, w_hh):
    """Pure-JAX reference matching torch.nn.LSTMCell semantics (biases = 0)."""
    gates = x @ w_ih.T + h @ w_hh.T
    H = h.shape[-1]
    i = jax.nn.sigmoid(gates[:, 0 * H:1 * H])
    f = jax.nn.sigmoid(gates[:, 1 * H:2 * H])
    g = jnp.tanh(gates[:, 2 * H:3 * H])
    o = jax.nn.sigmoid(gates[:, 3 * H:4 * H])
    c_new = f * c + i * g
    h_new = o * jnp.tanh(c_new)
    return h_new, c_new


if __name__ == "__main__":
    B, E, H, T = 8, 32, 32, 6

    key = jax.random.PRNGKey(0)
    k_w, k_x, k_h, k_c = jax.random.split(key, 4)

    params_k, (w_ih, w_hh) = init_state_net_params(k_w, E, H)
    embeds_seq = jax.random.normal(k_x, (T, B, E), jnp.float32)
    h0 = jax.random.normal(k_h, (B, H), jnp.float32)
    c0 = jax.random.normal(k_c, (B, H), jnp.float32)

    # Pure-JAX references.
    h1_ref, c1_ref = reference_lstm_cell(embeds_seq[0], h0, c0, w_ih, w_hh)
    h_ref, c_ref = h0, c0
    for t in range(T):
        h_ref, c_ref = reference_lstm_cell(embeds_seq[t], h_ref, c_ref, w_ih, w_hh)

    # 1) Single-step call: exact StateNet.forward semantics.
    h1, c1 = state_net_forward((h0, c0), embeds_seq[0], params_k)
    jax.block_until_ready((h1, c1))
    assert jnp.allclose(h1, h1_ref, atol=1e-4, rtol=1e-4)
    assert jnp.allclose(c1, c1_ref, atol=1e-4, rtol=1e-4)

    # 2) Whole sequence resident (grid=(1,), loop fully inside the kernel).
    hT, cT = state_net_forward_seq((h0, c0), embeds_seq, params_k)
    jax.block_until_ready((hT, cT))
    assert jnp.allclose(hT, h_ref, atol=1e-4, rtol=1e-4)
    assert jnp.allclose(cT, c_ref, atol=1e-4, rtol=1e-4)

    # 3) Chunked path (grid=(2,), padded last chunk masked) — exercises the
    #    carried-state accumulator and tail masking.
    hT2, cT2 = state_net_forward_seq((h0, c0), embeds_seq, params_k, t_chunk=4)
    jax.block_until_ready((hT2, cT2))
    assert jnp.allclose(hT2, h_ref, atol=1e-4, rtol=1e-4)
    assert jnp.allclose(cT2, c_ref, atol=1e-4, rtol=1e-4)

    # 4) bf16 MXU operands (recommended at production sizes); relaxed tolerance.
    hT3, cT3 = lstm_cell_seq(embeds_seq, h0, c0, params_k[0], params_k[1],
                             mxu_dtype=jnp.bfloat16)
    jax.block_until_ready((hT3, cT3))
    assert jnp.allclose(hT3, h_ref, atol=5e-2, rtol=5e-2)
    assert jnp.allclose(cT3, c_ref, atol=5e-2, rtol=5e-2)

    print("KERNEL_OK")
</pallas_src>

<mosaic_0001>
module attributes {stable_mosaic.version = 11 : i64} {
  func.func @kernel(%arg0: i32, %arg1: memref<1x8x32xf32, #tpu.memory_space<vmem>>, %arg2: memref<32x128xf32, #tpu.memory_space<vmem>>, %arg3: memref<32x128xf32, #tpu.memory_space<vmem>>, %arg4: memref<8x128xf32, #tpu.memory_space<vmem>>, %arg5: memref<8x128xf32, #tpu.memory_space<vmem>>, %arg6: memref<1x8x128xf32, #tpu.memory_space<vmem>>) attributes {dimension_semantics = [#tpu.dimension_semantics<arbitrary>], iteration_bounds = array<i64: 1>, scalar_prefetch = 0 : i64, scratch_operands = 1 : i64, tpu.core_type = #tpu.core_type<tc>, window_params = [{transform_indices = @transform_0, window_bounds = array<i64: 1, 8, 32>}, {pipeline_mode = #tpu.pipeline_mode<synchronous>, transform_indices = @transform_1, window_bounds = array<i64: 32, 128>}, {pipeline_mode = #tpu.pipeline_mode<synchronous>, transform_indices = @transform_2, window_bounds = array<i64: 32, 128>}, {pipeline_mode = #tpu.pipeline_mode<synchronous>, transform_indices = @transform_3, window_bounds = array<i64: 8, 128>}, {pipeline_mode = #tpu.pipeline_mode<synchronous>, transform_indices = @transform_4, window_bounds = array<i64: 8, 128>}]} {
    %c0_i32 = arith.constant 0 : i32
    %0 = arith.cmpi eq, %arg0, %c0_i32 : i32
    %1 = arith.extui %0 : i1 to i32
    %c0_i32_0 = arith.constant 0 : i32
    %2 = arith.cmpi ne, %1, %c0_i32_0 : i32
    scf.if %2 {
      %c0_23 = arith.constant 0 : index
      %c0_24 = arith.constant 0 : index
      %45 = vector.load %arg4[%c0_23, %c0_24] : memref<8x128xf32, #tpu.memory_space<vmem>>, vector<8x128xf32>
      %c0_25 = arith.constant 0 : index
      %c0_26 = arith.constant 0 : index
      %46 = vector.load %arg5[%c0_25, %c0_26] : memref<8x128xf32, #tpu.memory_space<vmem>>, vector<8x128xf32>
      tpu.vector_store %arg5[%c0_25, %c0_26], %45 {strides = array<i32>} : memref<8x128xf32, #tpu.memory_space<vmem>>, vector<8x128xf32>,
    } else {
    }
    %c0 = arith.constant 0 : index
    %c0_1 = arith.constant 0 : index
    %c0_2 = arith.constant 0 : index
    %3 = vector.load %arg1[%c0, %c0_1, %c0_2] : memref<1x8x32xf32, #tpu.memory_space<vmem>>, vector<1x8x32xf32>
    %4 = vector.shape_cast %3 : vector<1x8x32xf32> to vector<8x32xf32>
    %c0_3 = arith.constant 0 : index
    %c0_4 = arith.constant 0 : index
    %5 = vector.load %arg2[%c0_3, %c0_4] : memref<32x128xf32, #tpu.memory_space<vmem>>, vector<32x128xf32>
    %cst = arith.constant dense<0.000000e+00> : vector<8x128xf32>
    %6 = tpu.matmul %4, %5, %cst {dimension_numbers = #tpu.dot_dimension_numbers<[1], [0], [0], [1], [0, 0, 1, 1], [], []>} : vector<8x32xf32>, vector<32x128xf32>, vector<8x128xf32> -> vector<8x128xf32>
    %7 = vector.shape_cast %6 : vector<8x128xf32> to vector<1x8x128xf32>
    %c0_5 = arith.constant 0 : index
    %c0_6 = arith.constant 0 : index
    %c0_7 = arith.constant 0 : index
    %8 = vector.load %arg6[%c0_5, %c0_6, %c0_7] : memref<1x8x128xf32, #tpu.memory_space<vmem>>, vector<1x8x128xf32>
    tpu.vector_store %arg6[%c0_5, %c0_6, %c0_7], %7 {strides = array<i32>} : memref<1x8x128xf32, #tpu.memory_space<vmem>>, vector<1x8x128xf32>,
    %c0_8 = arith.constant 0 : index
    %c0_9 = arith.constant 0 : index
    %9 = vector.load %arg3[%c0_8, %c0_9] : memref<32x128xf32, #tpu.memory_space<vmem>>, vector<32x128xf32>
    %c0_10 = arith.constant 0 : index
    %c0_11 = arith.constant 0 : index
    %10 = vector.load %arg5[%c0_10, %c0_11] : memref<8x128xf32, #tpu.memory_space<vmem>>, vector<8x32xf32>
    %c0_12 = arith.constant 0 : index
    %c32 = arith.constant 32 : index
    %11 = vector.load %arg5[%c0_12, %c32] : memref<8x128xf32, #tpu.memory_space<vmem>>, vector<8x32xf32>
    %12 = tpu.iota {dimensions = array<i32: 1>} : vector<8x128xi32>
    %c64_i32 = arith.constant 64 : i32
    %13 = vector.broadcast %c64_i32 : i32 to vector<8x128xi32>
    %14 = arith.cmpi sge, %12, %13 : vector<8x128xi32>
    %c96_i32 = arith.constant 96 : i32
    %15 = vector.broadcast %c96_i32 : i32 to vector<8x128xi32>
    %16 = arith.cmpi slt, %12, %15 : vector<8x128xi32>
    %17 = arith.andi %14, %16 : vector<8x128xi1>
    %c0_i32_13 = arith.constant 0 : i32
    %18 = arith.index_cast %c0_i32_13 : i32 to index
    %c0_14 = arith.constant 0 : index
    %c0_15 = arith.constant 0 : index
    %19 = vector.load %arg6[%18, %c0_14, %c0_15] : memref<1x8x128xf32, #tpu.memory_space<vmem>>, vector<1x8x128xf32>
    %20 = vector.shape_cast %19 : vector<1x8x128xf32> to vector<8x128xf32>
    %cst_16 = arith.constant dense<0.000000e+00> : vector<8x128xf32>
    %21 = tpu.matmul %10, %9, %cst_16 {dimension_numbers = #tpu.dot_dimension_numbers<[1], [0], [0], [1], [0, 0, 1, 1], [], []>} : vector<8x32xf32>, vector<32x128xf32>, vector<8x128xf32> -> vector<8x128xf32>
    %22 = arith.addf %20, %21 : vector<8x128xf32>
    %23 = arith.negf %22 : vector<8x128xf32>
    %24 = math.exp %23 : vector<8x128xf32>
    %cst_17 = arith.constant 1.000000e+00 : f32
    %25 = vector.broadcast %cst_17 : f32 to vector<8x128xf32>
    %26 = arith.addf %25, %24 : vector<8x128xf32>
    %27 = arith.divf %25, %26 : vector<8x128xf32>
    %cst_18 = arith.constant 2.000000e+00 : f32
    %28 = vector.broadcast %cst_18 : f32 to vector<8x128xf32>
    %29 = arith.mulf %28, %27 : vector<8x128xf32>
    %cst_19 = arith.constant 1.000000e+00 : f32
    %30 = vector.broadcast %cst_19 : f32 to vector<8x128xf32>
    %31 = arith.subf %29, %30 : vector<8x128xf32>
    %32 = arith.select %17, %31, %27 : vector<8x128xi1>, vector<8x128xf32>
    %33 = vector.extract_strided_slice %32 {offsets = [0, 0], sizes = [8, 32], strides = [1, 1]} : vector<8x128xf32> to vector<8x32xf32>
    %34 = vector.extract_strided_slice %32 {offsets = [0, 32], sizes = [8, 32], strides = [1, 1]} : vector<8x128xf32> to vector<8x32xf32>
    %35 = vector.extract_strided_slice %32 {offsets = [0, 64], sizes = [8, 32], strides = [1, 1]} : vector<8x128xf32> to vector<8x32xf32>
    %36 = vector.extract_strided_slice %32 {offsets = [0, 96], sizes = [8, 32], strides = [1, 1]} : vector<8x128xf32> to vector<8x32xf32>
    %37 = arith.mulf %34, %11 : vector<8x32xf32>
    %38 = arith.mulf %33, %35 : vector<8x32xf32>
    %39 = arith.addf %37, %38 : vector<8x32xf32>
    %40 = math.tanh %39 : vector<8x32xf32>
    %41 = arith.mulf %36, %40 : vector<8x32xf32>
    %c1_i32 = arith.constant 1 : i32
    %cst_20 = arith.constant 0.000000e+00 : f32
    %42 = vector.broadcast %cst_20 : f32 to vector<8x64xf32>
    %43 = tpu.concatenate %41, %39, %42 in 1 : vector<8x32xf32>, vector<8x32xf32>, vector<8x64xf32> -> vector<8x128xf32>
    %c0_21 = arith.constant 0 : index
    %c0_22 = arith.constant 0 : index
    %44 = vector.load %arg5[%c0_21, %c0_22] : memref<8x128xf32, #tpu.memory_space<vmem>>, vector<8x128xf32>
    tpu.vector_store %arg5[%c0_21, %c0_22], %43 {strides = array<i32>} : memref<8x128xf32, #tpu.memory_space<vmem>>, vector<8x128xf32>,
    return
  }
  func.func @transform_0(%arg0: i32) -> (i32, i32, i32) {
    %c0_i32 = arith.constant 0 : i32
    %c0_i32_0 = arith.constant 0 : i32
    %c0_i32_1 = arith.constant 0 : i32
    return %arg0, %c0_i32, %c0_i32_0 : i32, i32, i32
  }
  func.func @transform_1(%arg0: i32) -> (i32, i32) {
    %c0_i32 = arith.constant 0 : i32
    %c0_i32_0 = arith.constant 0 : i32
    %c0_i32_1 = arith.constant 0 : i32
    return %c0_i32, %c0_i32_0 : i32, i32
  }
  func.func @transform_2(%arg0: i32) -> (i32, i32) {
    %c0_i32 = arith.constant 0 : i32
    %c0_i32_0 = arith.constant 0 : i32
    %c0_i32_1 = arith.constant 0 : i32
    return %c0_i32, %c0_i32_0 : i32, i32
  }
  func.func @transform_3(%arg0: i32) -> (i32, i32) {
    %c0_i32 = arith.constant 0 : i32
    %c0_i32_0 = arith.constant 0 : i32
    %c0_i32_1 = arith.constant 0 : i32
    return %c0_i32, %c0_i32_0 : i32, i32
  }
  func.func @transform_4(%arg0: i32) -> (i32, i32) {
    %c0_i32 = arith.constant 0 : i32
    %c0_i32_0 = arith.constant 0 : i32
    %c0_i32_1 = arith.constant 0 : i32
    return %c0_i32, %c0_i32_0 : i32, i32
  }
}

</mosaic_0001>

<llo_original>
// kernel: lstm_cell_seq.1
$region0: #{lstm_cell_seq.1}
  #allocation0 [shape = 'u32[]', space=smem, size = 0x4, offset = 0x4, fixed_abs, tag = 'smem constant byte address 0x4 - core index']
  #allocation1 [shape = 'u32[72,128]{1,0:T(1,128)}', space=vmem, size = 0x9000, scoped, tag = 'internal scratch']
  #allocation2 [shape = 'f32[1,8,128]{2,1,0:T(8,128)}', space=vmem, size = 0x1000, scoped, tag = 'scratch operand']
  %s0 = inlined_call_operand.hbm [shape: f32[1,8,32], index: 0, kind: input, shape index: {}]
  %s1 = inlined_call_operand.vmem [shape: f32[32,128], index: 1, kind: input, shape index: {}]
  %s2 = inlined_call_operand.hbm [shape: f32[32,128], index: 2, kind: input, shape index: {}]
  %s3 = inlined_call_operand.vmem [shape: f32[8,128], index: 3, kind: input, shape index: {}]
  %s4 = inlined_call_operand.vmem [shape: f32[8,128], index: 4, kind: output, shape index: {}]
  %s5 = sld [smem:[#allocation0]]
  $region38: #{lstm_cell_seq.1} parent=0
    _
  %s7 = ssub.s32 1, %s5
  %s8 = scalar_select 0, %s7, %s5
  $region1: #{lstm_cell_seq.1} parent=0
    #allocation3 [shape = 'u8[4096]{0}', space=vmem, size = 0x1000, scoped, tag = 'input window, operand 0, single buffered']
    #allocation4 [shape = 's32[1]{0}', space=sflag, size = 0x4, scoped, tag = 'scoped memory for lstm_cell_seq.1']
    #allocation5 [shape = 'u8[16384]{0}', space=vmem, size = 0x4000, scoped, tag = 'input window, operand 2, single buffered']
    #allocation6 [shape = 's32[1]{0}', space=sflag, size = 0x4, scoped, tag = 'scoped memory for lstm_cell_seq.1']
    %9 = vsyncpa [#allocation4], 0
    %10 = vsyncpa [#allocation6], 0
    // Predicated region
    $region2: #{lstm_cell_seq.1} parent=1 // pred_check
      _
    $region3: #{lstm_cell_seq.1} parent=1 // pred_check_branch
      %12 = sbr.rel (0) target = $region5
    $region4: #{lstm_cell_seq.1} parent=1 // pred_region
      %14 = vsyncadd [#allocation4], 0
      %s16 = sshll.u32 %s0, 4
      %s17 = int_to_ptr.hbm [resolvable:$true] %s16
      %s18 = sshll.u32 [#allocation3], 4
      %s19 = int_to_ptr.vmem [resolvable:$true] %s18
      %21 = dma.hbm_to_vmem [thread:$0]  %s17, 128, %s19, [#allocation4]
    $region5: #{lstm_cell_seq.1} parent=1 // pred_fallthru
      _
    // Predicated region
    $region6: #{lstm_cell_seq.1} parent=1 // pred_check
      _
    $region7: #{lstm_cell_seq.1} parent=1 // pred_check_branch
      %23 = sbr.rel (0) target = $region9
    $region8: #{lstm_cell_seq.1} parent=1 // pred_region
      _
    $region9: #{lstm_cell_seq.1} parent=1 // pred_fallthru
      _
    // Predicated region
    $region10: #{lstm_cell_seq.1} parent=1 // pred_check
      _
    $region11: #{lstm_cell_seq.1} parent=1 // pred_check_branch
      %25 = sbr.rel (0) target = $region13
    $region12: #{lstm_cell_seq.1} parent=1 // pred_region
      %27 = vsyncadd [#allocation6], 0
      %s28 = sshll.u32 %s2, 4
      %s29 = int_to_ptr.hbm [resolvable:$true] %s28
      %s30 = sshll.u32 [#allocation5], 4
      %s31 = int_to_ptr.vmem [resolvable:$true] %s30
      %36 = dma.hbm_to_vmem [thread:$0]  %s29, 512, %s31, [#allocation6], 128, 128, 8
    $region13: #{lstm_cell_seq.1} parent=1 // pred_fallthru
      _
    // Predicated region
    $region14: #{lstm_cell_seq.1} parent=1 // pred_check
      _
    $region15: #{lstm_cell_seq.1} parent=1 // pred_check_branch
      %38 = sbr.rel (0) target = $region17
    $region16: #{lstm_cell_seq.1} parent=1 // pred_region
      _
    $region17: #{lstm_cell_seq.1} parent=1 // pred_fallthru
      _
    // Predicated region
    $region18: #{lstm_cell_seq.1} parent=1 // pred_check
      _
    $region19: #{lstm_cell_seq.1} parent=1 // pred_check_branch
      %40 = sbr.rel (0) target = $region21
    $region20: #{lstm_cell_seq.1} parent=1 // pred_region
      %42 = dma.done [#allocation4], 128
    $region21: #{lstm_cell_seq.1} parent=1 // pred_fallthru
      _
    // Predicated region
    $region22: #{lstm_cell_seq.1} parent=1 // pred_check
      _
    $region23: #{lstm_cell_seq.1} parent=1 // pred_check_branch
      %44 = sbr.rel (0) target = $region25
    $region24: #{lstm_cell_seq.1} parent=1 // pred_region
      %46 = dma.done [#allocation6], 512
    $region25: #{lstm_cell_seq.1} parent=1 // pred_fallthru
      _
    %p47 = scmp.eq.s32.totalorder 0, 0
    // Predicated region
    $region26: #{lstm_cell_seq.1} parent=1 // pred_check
      %p48 = pneg %p47
    $region27: #{lstm_cell_seq.1} parent=1 // pred_check_branch
      %50 = sbr.rel (%p48) target = $region29
    $region28: #{lstm_cell_seq.1} parent=1 // pred_region
      %v51 = vld [vmem:[%s3] sm:$0xff]
      %52 = vst [vmem:[%s4] sm:$0xff] %v51
    $region29: #{lstm_cell_seq.1} parent=1 // pred_fallthru
      _
    %v53 = vld [vmem:[#allocation3] sm:$0xff]
    %v54 = vld [vmem:[%s1] sm:$0xff]
    %v55 = vld [vmem:[%s1 + $0x8] sm:$0xff]
    %v56 = vld [vmem:[%s1 + $0x10] sm:$0xff]
    %v57 = vld [vmem:[%s1 + $0x18] sm:$0xff]
    %vm58 = vcmask 261120
    %v60 = vsel %vm58, %v53, 0
    %62 = vmatpush.msra.mxu0 0.0
    %63 = vmatpush.msra.mxu0 0.0
    %64 = vmatpush.msra.mxu0 0.0
    %65 = vmatpush.msra.mxu0 0.0
    %66 = vmatpush.msra.mxu0 0.0
    %67 = vmatpush.msra.mxu0 0.0
    %68 = vmatpush.msra.mxu0 0.0
    %69 = vmatpush.msra.mxu0 0.0
    %70 = vmatpush.msra.mxu0 0.0
    %71 = vmatpush.msra.mxu0 0.0
    %72 = vmatpush.msra.mxu0 0.0
    %73 = vmatpush.msra.mxu0 0.0
    %74 = vmatpush.msra.mxu0 %v57
    %75 = vmatpush.msra.mxu0 %v56
    %76 = vmatpush.msra.mxu0 %v55
    %77 = vmatpush.msra.mxu0 %v54
    %78 = vmatmul.f32.gmra.mxu0 %v60
    %v79 = vpop.f32.mrf.mxu0
    %v80 = vadd.f32 0.0, %v79
    %81 = vdwg.mxu0
    %82 = vst [vmem:[#allocation2] sm:$0xff] %v80
    %v83 = vld [vmem:[#allocation5] sm:$0xff]
    %v84 = vld [vmem:[#allocation5 + $0x8] sm:$0xff]
    %v85 = vld [vmem:[#allocation5 + $0x10] sm:$0xff]
    %v86 = vld [vmem:[#allocation5 + $0x18] sm:$0xff]
    %v87 = vld [vmem:[%s4] sm:$0xff]
    %v88 = vlaneseq
    %v89 = vand.u32 %v88, 127
    %vm90 = vcmp.ge.s32.totalorder %v89, 64
    %vm91 = vcmp.lt.s32.totalorder %v89, 96
    %vm92 = vmand %vm90, %vm91
    %v93 = vld [vmem:[#allocation2] sm:$0xff]
    %v95 = vsel %vm58, %v87, 0
    %97 = vmatpush.msra.mxu0 0.0
    %98 = vmatpush.msra.mxu0 0.0
    %99 = vmatpush.msra.mxu0 0.0
    %100 = vmatpush.msra.mxu0 0.0
    %101 = vmatpush.msra.mxu0 0.0
    %102 = vmatpush.msra.mxu0 0.0
    %103 = vmatpush.msra.mxu0 0.0
    %104 = vmatpush.msra.mxu0 0.0
    %105 = vmatpush.msra.mxu0 0.0
    %106 = vmatpush.msra.mxu0 0.0
    %107 = vmatpush.msra.mxu0 0.0
    %108 = vmatpush.msra.mxu0 0.0
    %109 = vmatpush.msra.mxu0 %v86
    %110 = vmatpush.msra.mxu0 %v85
    %111 = vmatpush.msra.mxu0 %v84
    %112 = vmatpush.msra.mxu0 %v83
    %113 = vmatmul.f32.gmra.mxu0 %v95
    %v114 = vpop.f32.mrf.mxu0
    %v115 = vadd.f32 0.0, %v114
    %116 = vdwg.mxu0
    %v117 = vadd.f32 %v93, %v115
    %v118 = vxor.u32 %v117, 2147483648
    %v119 = vmul.f32 %v118, 1.442695
    %v120 = vpow.pop %v119
    %v121 = vadd.f32 %v120, 1.0
    %v122 = vrcp.pop %v121
    %v123 = vmul.f32 %v121, %v122
    %v124 = vsub.f32 1.0, %v123
    %v125 = vmul.f32 %v122, %v124
    %v126 = vadd.f32 %v122, %v125
    %vm127 = vweird.f32 %v121
    %vm128 = vweird.f32 %v122
    %vm129 = vmor %vm127, %vm128
    %v130 = vsel %vm129, %v122, %v126
    %v131 = vand.u32 2147483647, %v121
    %vm132 = vcmp.eq.f32.partialorder %v131, 8.507059e+37
    %v133 = vand.u32 %v121, 2147483648
    %v134 = vor.u32 1.1754944e-38, %v133
    %v135 = vsel %vm132, %v134, %v130
    %v136 = vmul.f32 1.0, %v135
    %v137 = vmul.f32 %v136, 2.0
    %v138 = vsub.f32 %v137, 1.0
    %v139 = vsel %vm92, %v138, %v136
    %v140 = vmul.f32 %v139, %v87
    %142 = vrot.lane.b32.xlu0 %v139, 64
    %v143 = vpop.permute.xlu0 %142
    %v145 = vmul.f32 %v139, %v143
    %147 = vrot.lane.b32.xlu0 %v145, 32
    %v148 = vpop.permute.xlu0 %147
    %v150 = vadd.f32 %v140, %v148
    %v151 = vtanh.pop %v150
    %153 = vrot.lane.b32.xlu0 %v151, 64
    %v154 = vpop.permute.xlu0 %153
    %v156 = vmul.f32 %v139, %v154
    %158 = vrot.lane.b32.xlu0 %v156, 32
    %v159 = vpop.permute.xlu0 %158
    %v161 = vsel %vm58, %v159, %v150
    %vm162 = vcmask 523264
    %v163 = vsel %vm162, %v161, 0.0
    %164 = vst [vmem:[%s4] sm:$0xff] %v163
    // Predicated region
    $region30: #{lstm_cell_seq.1} parent=1 // pred_check
      _
    $region31: #{lstm_cell_seq.1} parent=1 // pred_check_branch
      %166 = sbr.rel (0) target = $region33
    $region32: #{lstm_cell_seq.1} parent=1 // pred_region
      _
    $region33: #{lstm_cell_seq.1} parent=1 // pred_fallthru
      _
    // Predicated region
    $region34: #{lstm_cell_seq.1} parent=1 // pred_check
      _
    $region35: #{lstm_cell_seq.1} parent=1 // pred_check_branch
      %168 = sbr.rel (0) target = $region37
    $region36: #{lstm_cell_seq.1} parent=1 // pred_region
      _
    $region37: #{lstm_cell_seq.1} parent=1 // pred_fallthru
      _
    %169 = vsyncpa [#allocation4], 1
    %170 = vsyncpa [#allocation6], 1

</llo_original>
